<compile_context>
chip_gen: v6e
topology: v6e:2x2x1
jax: 0.10.0
libtpu: 0.0.40
codegen_flags: <defaults>
</compile_context>

<pallas_src>
import functools

import jax
import jax.numpy as jnp
from jax.experimental import pallas as pl
from jax.experimental.pallas import tpu as pltpu

EPS = 1e-6
_VMEM_BUDGET = 24 * 1024 * 1024  # conservative working-set budget (fits v7x scoped VMEM)


def _round_up(x, m):
    return (x + m - 1) // m * m


# ----------------------------- fused kernel ----------------------------------


def fused_sublayer_kernel(seed_ref, x_ref, g_ref, b_ref, w_ref, bias_ref, o_ref,
                          *, p, training):
    """o = x + dropout(gelu(LayerNorm(x) @ W + bias)), all on one resident row tile."""
    x = x_ref[...]
    xf = x.astype(jnp.float32)
    n = xf.shape[-1]

    # --- LayerNorm (torch parity: unbiased variance, eps added to std) ---
    # sum(x) and sum(x*x) are independent XLU reductions (better ILP than the
    # two-pass mean / sum((x-mean)^2) form); ddof=1 correction kept.
    s1 = jnp.sum(xf, axis=-1, keepdims=True)
    s2 = jnp.sum(xf * xf, axis=-1, keepdims=True)
    mean = s1 * (1.0 / n)
    var = (s2 - s1 * mean) * (1.0 / (n - 1))
    var = jnp.maximum(var, 0.0)                 # guard tiny negative from cancellation
    inv = 1.0 / (jnp.sqrt(var) + EPS)           # exact (only (tm,1) wide); torch parity
    normed = (xf - mean) * inv * g_ref[...] + b_ref[...]

    # --- Sublayer: Linear + GELU on the MXU.  Operands in w_ref.dtype (bf16 by
    # default, MXU-native on v5e/v6e/v7x); accumulate in f32. ---
    acc = jnp.dot(normed.astype(w_ref.dtype), w_ref[...],
                  preferred_element_type=jnp.float32)
    y = jax.nn.gelu(acc + bias_ref[...])        # tanh GELU, matches BERT-pytorch

    # --- Dropout (inverted scaling) via a counter-based hash PRNG ---
    if training and p >= 1.0:
        y = jnp.zeros_like(y)
    elif training and p > 0.0:
        rows, cols = y.shape
        rid = jax.lax.broadcasted_iota(jnp.int32, (rows, cols), 0)
        cid = jax.lax.broadcasted_iota(jnp.int32, (rows, cols), 1)
        ctr = (pl.program_id(0) * rows + rid) * cols + cid
        h = ctr.astype(jnp.uint32) ^ (seed_ref[0].astype(jnp.uint32)
                                      * jnp.uint32(0x9E3779B9))
        # splitmix32-style finalizer (plain VPU integer ops; no pltpu.prng_*).
        h = (h ^ (h >> 16)) * jnp.uint32(0x7FEB352D)
        h = (h ^ (h >> 15)) * jnp.uint32(0x846CA68B)
        h = h ^ (h >> 16)
        # Drop iff h < p * 2^32 (clamped to avoid uint32 overflow at p ~ 1).
        threshold = jnp.uint32(min(int(p * 4294967296.0), 4294967295))
        y = jnp.where(h >= threshold, y * (1.0 / (1.0 - p)), 0.0)

    # --- Residual add from the same resident VMEM tile (single HBM round trip) ---
    o_ref[...] = (xf + y).astype(o_ref.dtype)


# ----------------------------- wrapper ----------------------------------------


def sublayer_connection(x, gamma, beta, w, b, *, dropout_p=0.1, training=False,
                        seed=0, tile_rows=512, matmul_dtype=jnp.bfloat16):
    """output = x + dropout(gelu(layer_norm(x) @ W + b)), fused in one kernel."""
    B, S, H = x.shape
    assert w.shape[0] == H
    Hout = w.shape[1]
    assert Hout == H, "residual connection requires sublayer output size == hidden"

    R = B * S
    x2d = x.reshape(R, H)
    x_itemsize = x2d.dtype.itemsize

    # Grid-invariant operands: cast ONCE here, not per grid step in the kernel.
    gamma_f32 = gamma.reshape(1, H).astype(jnp.float32)
    beta_f32 = beta.reshape(1, H).astype(jnp.float32)
    bias_f32 = b.reshape(1, Hout).astype(jnp.float32)
    w_mm = w.astype(matmul_dtype)      # bf16 by default: MXU-native, halves W VMEM/HBM

    # Row tile: >=128 rows (never a single-vreg tile), multiple of 16 (bf16
    # sublane packing), shrunk until the working set fits a conservative VMEM
    # budget so the same kernel is safe on v7x's 64 MiB VMEM.
    tm = int(min(tile_rows, max(128, _round_up(R, 8))))
    tm = _round_up(tm, 16)
    const_bytes = 2 * H * Hout * w_mm.dtype.itemsize + 6 * (H + Hout) * 4

    def _tile_bytes(t):
        return (2 * t * H * x_itemsize          # x tile (double-buffered)
                + 2 * t * Hout * x_itemsize     # out tile (double-buffered)
                + 4 * t * max(H, Hout) * 4)     # f32 in-kernel temporaries (headroom)

    while tm > 16 and const_bytes + _tile_bytes(tm) > _VMEM_BUDGET:
        tm = max(16, _round_up(tm // 2, 16))
    # NOTE: for H >~ 2048 f32 a second grid axis over output columns (W block
    # (H, tn), LN cached under pl.when(j == 0)) would bound W's working set;
    # unnecessary at BERT-base / demo sizes.

    Rp = _round_up(R, tm)
    if Rp != R:
        x2d = jnp.pad(x2d, ((0, Rp - R), (0, 0)))

    vmem_limit = int(min(48 * 1024 * 1024,
                         max(32 * 1024 * 1024,
                             2 * (const_bytes + _tile_bytes(tm)))))

    seed_arr = jnp.asarray([seed], dtype=jnp.int32)
    kernel = functools.partial(fused_sublayer_kernel, p=float(dropout_p),
                               training=bool(training))

    cost = pl.CostEstimate(
        flops=2 * Rp * H * Hout + 12 * Rp * H,
        transcendentals=Rp * Hout,
        bytes_accessed=(Rp * H * x_itemsize + Rp * Hout * x_itemsize
                        + H * Hout * w_mm.dtype.itemsize),
    )

    out2d = pl.pallas_call(
        kernel,
        out_shape=jax.ShapeDtypeStruct((Rp, Hout), x.dtype),
        grid=(Rp // tm,),
        in_specs=[
            pl.BlockSpec(memory_space=pltpu.MemorySpace.SMEM),   # seed scalar
            pl.BlockSpec((tm, H), lambda i: (i, 0)),             # x tile
            pl.BlockSpec((1, H), lambda i: (0, 0)),              # gamma (grid-invariant)
            pl.BlockSpec((1, H), lambda i: (0, 0)),              # beta  (grid-invariant)
            pl.BlockSpec((H, Hout), lambda i: (0, 0)),           # W     (grid-invariant)
            pl.BlockSpec((1, Hout), lambda i: (0, 0)),           # bias  (grid-invariant)
        ],
        out_specs=pl.BlockSpec((tm, Hout), lambda i: (i, 0)),
        compiler_params=pltpu.CompilerParams(
            dimension_semantics=("parallel",),
            vmem_limit_bytes=vmem_limit,
        ),
        cost_estimate=cost,
    )(seed_arr, x2d, gamma_f32, beta_f32, w_mm, bias_f32)

    if Rp != R:
        out2d = out2d[:R]
    return out2d.reshape(B, S, Hout)


# ----------------------------- reference --------------------------------------


def reference_no_dropout(x, gamma, beta, w, b):
    xf = x.astype(jnp.float32)
    mean = jnp.mean(xf, axis=-1, keepdims=True)
    d = xf - mean
    var = jnp.sum(d * d, axis=-1, keepdims=True) / (x.shape[-1] - 1)
    normed = gamma * d / (jnp.sqrt(var) + EPS) + beta
    sub = jax.nn.gelu(normed @ w.astype(jnp.float32) + b)
    return xf + sub  # dropout is identity in eval mode


# ----------------------------- main --------------------------------------------


if __name__ == "__main__":
    # SublayerConnection(size=H, dropout=0.1); H chosen lane-dense (multiple of 128).
    B, S, H = 2, 8, 128

    key = jax.random.PRNGKey(0)
    kx, kw = jax.random.split(key)

    x = jax.random.normal(kx, (B, S, H), dtype=jnp.float32)

    # LayerNorm params: a_2 = ones, b_2 = zeros (module's deterministic init).
    gamma = jnp.ones((H,), dtype=jnp.float32)
    beta = jnp.zeros((H,), dtype=jnp.float32)

    # Concrete 'sublayer' = Linear + GELU, fused into the kernel.
    w = jax.random.normal(kw, (H, H), dtype=jnp.float32) * 0.02
    b = jnp.zeros((H,), dtype=jnp.float32)

    ref = reference_no_dropout(x, gamma, beta, w, b)

    # Eval mode (dropout identity), default bf16 MXU matmul.  Tolerance covers
    # the bf16 operand cast; LN and the residual stay f32 in-kernel.
    out_eval = sublayer_connection(x, gamma, beta, w, b,
                                   dropout_p=0.1, training=False)
    out_eval = jax.block_until_ready(out_eval)
    assert out_eval.shape == (B, S, H)
    assert jnp.allclose(out_eval, ref, atol=2e-2, rtol=2e-2), "mismatch vs reference"

    # Training mode — exercise the fused in-kernel dropout path.
    out_train = sublayer_connection(x, gamma, beta, w, b,
                                    dropout_p=0.1, training=True, seed=1234)
    out_train = jax.block_until_ready(out_train)
    assert out_train.shape == (B, S, H)
    assert bool(jnp.all(jnp.isfinite(out_train)))
    # Dropped positions satisfy out == x exactly (y == 0); expect roughly p of them.
    dropped_frac = float(jnp.mean((out_train == x).astype(jnp.float32)))
    assert 0.01 < dropped_frac < 0.35, f"unexpected dropout rate {dropped_frac}"

    print("KERNEL_OK")
</pallas_src>

<mosaic_0001>
module attributes {stable_mosaic.version = 11 : i64} {
  func.func @fused_sublayer_kernel(%arg0: i32, %arg1: memref<1xi32, #tpu.memory_space<smem>>, %arg2: memref<128x128xf32, #tpu.memory_space<vmem>>, %arg3: memref<1x128xf32, #tpu.memory_space<vmem>>, %arg4: memref<1x128xf32, #tpu.memory_space<vmem>>, %arg5: memref<128x128xbf16, #tpu.memory_space<vmem>>, %arg6: memref<1x128xf32, #tpu.memory_space<vmem>>, %arg7: memref<128x128xf32, #tpu.memory_space<vmem>>) attributes {dimension_semantics = [#tpu.dimension_semantics<parallel>], iteration_bounds = array<i64: 1>, scalar_prefetch = 0 : i64, scratch_operands = 0 : i64, tpu.core_type = #tpu.core_type<tc>, window_params = [{transform_indices = @transform_0, window_bounds = array<i64: 1>}, {transform_indices = @transform_1, window_bounds = array<i64: 128, 128>}, {pipeline_mode = #tpu.pipeline_mode<synchronous>, transform_indices = @transform_2, window_bounds = array<i64: 1, 128>}, {pipeline_mode = #tpu.pipeline_mode<synchronous>, transform_indices = @transform_3, window_bounds = array<i64: 1, 128>}, {pipeline_mode = #tpu.pipeline_mode<synchronous>, transform_indices = @transform_4, window_bounds = array<i64: 128, 128>}, {pipeline_mode = #tpu.pipeline_mode<synchronous>, transform_indices = @transform_5, window_bounds = array<i64: 1, 128>}, {transform_indices = @transform_6, window_bounds = array<i64: 128, 128>}]} {
    %c0 = arith.constant 0 : index
    %c0_0 = arith.constant 0 : index
    %0 = vector.load %arg2[%c0, %c0_0] : memref<128x128xf32, #tpu.memory_space<vmem>>, vector<128x128xf32>
    %cst = arith.constant dense<0.000000e+00> : vector<128xf32>
    %1 = vector.multi_reduction <add>, %0, %cst [1] : vector<128x128xf32> to vector<128xf32>
    %2 = vector.shape_cast %1 : vector<128xf32> to vector<128x1xf32>
    %3 = arith.mulf %0, %0 : vector<128x128xf32>
    %cst_1 = arith.constant dense<0.000000e+00> : vector<128xf32>
    %4 = vector.multi_reduction <add>, %3, %cst_1 [1] : vector<128x128xf32> to vector<128xf32>
    %5 = vector.shape_cast %4 : vector<128xf32> to vector<128x1xf32>
    %cst_2 = arith.constant 7.812500e-03 : f32
    %6 = vector.broadcast %cst_2 : f32 to vector<128x1xf32>
    %7 = arith.mulf %2, %6 : vector<128x1xf32>
    %8 = arith.mulf %2, %7 : vector<128x1xf32>
    %9 = arith.subf %5, %8 : vector<128x1xf32>
    %cst_3 = arith.constant 0.00787401571 : f32
    %10 = vector.broadcast %cst_3 : f32 to vector<128x1xf32>
    %11 = arith.mulf %9, %10 : vector<128x1xf32>
    %cst_4 = arith.constant 0.000000e+00 : f32
    %12 = vector.broadcast %cst_4 : f32 to vector<128x1xf32>
    %13 = arith.maximumf %11, %12 : vector<128x1xf32>
    %14 = math.sqrt %13 : vector<128x1xf32>
    %cst_5 = arith.constant 9.99999997E-7 : f32
    %15 = vector.broadcast %cst_5 : f32 to vector<128x1xf32>
    %16 = arith.addf %14, %15 : vector<128x1xf32>
    %cst_6 = arith.constant 1.000000e+00 : f32
    %17 = vector.broadcast %cst_6 : f32 to vector<128x1xf32>
    %18 = arith.divf %17, %16 : vector<128x1xf32>
    %19 = vector.broadcast %7 : vector<128x1xf32> to vector<128x128xf32>
    %20 = arith.subf %0, %19 : vector<128x128xf32>
    %21 = vector.broadcast %18 : vector<128x1xf32> to vector<128x128xf32>
    %22 = arith.mulf %20, %21 : vector<128x128xf32>
    %c0_7 = arith.constant 0 : index
    %c0_8 = arith.constant 0 : index
    %23 = vector.load %arg3[%c0_7, %c0_8] : memref<1x128xf32, #tpu.memory_space<vmem>>, vector<1x128xf32>
    %24 = vector.broadcast %23 : vector<1x128xf32> to vector<128x128xf32>
    %25 = arith.mulf %22, %24 : vector<128x128xf32>
    %c0_9 = arith.constant 0 : index
    %c0_10 = arith.constant 0 : index
    %26 = vector.load %arg4[%c0_9, %c0_10] : memref<1x128xf32, #tpu.memory_space<vmem>>, vector<1x128xf32>
    %27 = vector.broadcast %26 : vector<1x128xf32> to vector<128x128xf32>
    %28 = arith.addf %25, %27 : vector<128x128xf32>
    %29 = arith.truncf %28 : vector<128x128xf32> to vector<128x128xbf16>
    %c0_11 = arith.constant 0 : index
    %c0_12 = arith.constant 0 : index
    %30 = vector.load %arg5[%c0_11, %c0_12] : memref<128x128xbf16, #tpu.memory_space<vmem>>, vector<128x128xbf16>
    %cst_13 = arith.constant dense<0.000000e+00> : vector<128x128xf32>
    %31 = tpu.matmul %29, %30, %cst_13 {dimension_numbers = #tpu.dot_dimension_numbers<[1], [0], [0], [1], [0, 0, 1, 1], [], []>} : vector<128x128xbf16>, vector<128x128xbf16>, vector<128x128xf32> -> vector<128x128xf32>
    %c0_14 = arith.constant 0 : index
    %c0_15 = arith.constant 0 : index
    %32 = vector.load %arg6[%c0_14, %c0_15] : memref<1x128xf32, #tpu.memory_space<vmem>>, vector<1x128xf32>
    %33 = vector.broadcast %32 : vector<1x128xf32> to vector<128x128xf32>
    %34 = arith.addf %31, %33 : vector<128x128xf32>
    %35 = arith.mulf %34, %34 : vector<128x128xf32>
    %36 = arith.mulf %34, %35 : vector<128x128xf32>
    %cst_16 = arith.constant 4.471500e-02 : f32
    %37 = vector.broadcast %cst_16 : f32 to vector<128x128xf32>
    %38 = arith.mulf %37, %36 : vector<128x128xf32>
    %39 = arith.addf %34, %38 : vector<128x128xf32>
    %cst_17 = arith.constant 0.797884583 : f32
    %40 = vector.broadcast %cst_17 : f32 to vector<128x128xf32>
    %41 = arith.mulf %40, %39 : vector<128x128xf32>
    %42 = math.tanh %41 : vector<128x128xf32>
    %cst_18 = arith.constant 1.000000e+00 : f32
    %43 = vector.broadcast %cst_18 : f32 to vector<128x128xf32>
    %44 = arith.addf %43, %42 : vector<128x128xf32>
    %cst_19 = arith.constant 5.000000e-01 : f32
    %45 = vector.broadcast %cst_19 : f32 to vector<128x128xf32>
    %46 = arith.mulf %45, %44 : vector<128x128xf32>
    %47 = arith.mulf %34, %46 : vector<128x128xf32>
    %48 = arith.addf %0, %47 : vector<128x128xf32>
    %c0_20 = arith.constant 0 : index
    %c0_21 = arith.constant 0 : index
    %49 = vector.load %arg7[%c0_20, %c0_21] : memref<128x128xf32, #tpu.memory_space<vmem>>, vector<128x128xf32>
    tpu.vector_store %arg7[%c0_20, %c0_21], %48 {strides = array<i32>} : memref<128x128xf32, #tpu.memory_space<vmem>>, vector<128x128xf32>,
    return
  }
  func.func @transform_0(%arg0: i32) -> i32 {
    %c0_i32 = arith.constant 0 : i32
    %c0_i32_0 = arith.constant 0 : i32
    return %c0_i32 : i32
  }
  func.func @transform_1(%arg0: i32) -> (i32, i32) {
    %c0_i32 = arith.constant 0 : i32
    %c0_i32_0 = arith.constant 0 : i32
    return %arg0, %c0_i32 : i32, i32
  }
  func.func @transform_2(%arg0: i32) -> (i32, i32) {
    %c0_i32 = arith.constant 0 : i32
    %c0_i32_0 = arith.constant 0 : i32
    %c0_i32_1 = arith.constant 0 : i32
    return %c0_i32, %c0_i32_0 : i32, i32
  }
  func.func @transform_3(%arg0: i32) -> (i32, i32) {
    %c0_i32 = arith.constant 0 : i32
    %c0_i32_0 = arith.constant 0 : i32
    %c0_i32_1 = arith.constant 0 : i32
    return %c0_i32, %c0_i32_0 : i32, i32
  }
  func.func @transform_4(%arg0: i32) -> (i32, i32) {
    %c0_i32 = arith.constant 0 : i32
    %c0_i32_0 = arith.constant 0 : i32
    %c0_i32_1 = arith.constant 0 : i32
    return %c0_i32, %c0_i32_0 : i32, i32
  }
  func.func @transform_5(%arg0: i32) -> (i32, i32) {
    %c0_i32 = arith.constant 0 : i32
    %c0_i32_0 = arith.constant 0 : i32
    %c0_i32_1 = arith.constant 0 : i32
    return %c0_i32, %c0_i32_0 : i32, i32
  }
  func.func @transform_6(%arg0: i32) -> (i32, i32) {
    %c0_i32 = arith.constant 0 : i32
    %c0_i32_0 = arith.constant 0 : i32
    return %arg0, %c0_i32 : i32, i32
  }
}

</mosaic_0001>

<llo_original>
// kernel: tpu_custom_call.1
$region0: #{tpu_custom_call.1}
  #allocation0 [shape = 'u32[]', space=smem, size = 0x4, offset = 0x4, fixed_abs, tag = 'smem constant byte address 0x4 - core index']
  #allocation1 [shape = 'u32[144,128]{1,0:T(1,128)}', space=vmem, size = 0x12000, scoped, tag = 'internal scratch']
  #allocation2 [shape = 's32[1]{0:T(128)S(6)}', space=smem, size = 0x200, scoped, tag = 'scoped memory for tpu_custom_call.1']
  %s0 = inlined_call_operand.<no memory space> [shape: s32[1], index: 0, kind: input, shape index: {}]
  %s1 = inlined_call_operand.hbm [shape: f32[128,128], index: 1, kind: input, shape index: {}]
  %s2 = inlined_call_operand.vmem [shape: f32[1,128], index: 2, kind: input, shape index: {}]
  %s3 = inlined_call_operand.vmem [shape: f32[1,128], index: 3, kind: input, shape index: {}]
  %s4 = inlined_call_operand.hbm [shape: bf16[128,128], index: 4, kind: input, shape index: {}]
  %s5 = inlined_call_operand.vmem [shape: f32[1,128], index: 5, kind: input, shape index: {}]
  %s6 = inlined_call_operand.hbm [shape: f32[128,128], index: 6, kind: output, shape index: {}]
  %s7 = sld [smem:[#allocation0]]
  $region42: #{tpu_custom_call.1} parent=0
    _
  %s9 = ssub.s32 1, %s7
  %s10 = scalar_select 0, %s9, %s7
  %11 = sst [smem:[#allocation2]] %s0
  $region1: #{tpu_custom_call.1} parent=0
    #allocation3 [shape = 'u8[65536]{0}', space=vmem, size = 0x10000, scoped, tag = 'input window, operand 1, single buffered']
    #allocation4 [shape = 's32[1]{0}', space=sflag, size = 0x4, scoped, tag = 'scoped memory for tpu_custom_call.1']
    #allocation5 [shape = 's32[1]{0}', space=sflag, size = 0x4, scoped, tag = 'scoped memory for tpu_custom_call.1']
    #allocation6 [shape = 'u8[32768]{0}', space=vmem, size = 0x8000, scoped, tag = 'input window, operand 4, single buffered']
    #allocation7 [shape = 's32[1]{0}', space=sflag, size = 0x4, scoped, tag = 'scoped memory for tpu_custom_call.1']
    #allocation8 [shape = 'u8[65536]{0}', space=vmem, size = 0x10000, scoped, tag = 'output window, operand 0, single buffered']
    %12 = vsyncpa [#allocation4], 0
    %13 = vsyncpa [#allocation7], 0
    %14 = vsyncpa [#allocation5], 0
    // Predicated region
    $region2: #{tpu_custom_call.1} parent=1 // pred_check
      _
    $region3: #{tpu_custom_call.1} parent=1 // pred_check_branch
      %16 = sbr.rel (0) target = $region5
    $region4: #{tpu_custom_call.1} parent=1 // pred_region
      _
    $region5: #{tpu_custom_call.1} parent=1 // pred_fallthru
      _
    // Predicated region
    $region6: #{tpu_custom_call.1} parent=1 // pred_check
      _
    $region7: #{tpu_custom_call.1} parent=1 // pred_check_branch
      %18 = sbr.rel (0) target = $region9
    $region8: #{tpu_custom_call.1} parent=1 // pred_region
      %s20 = ssub.s32 2048, 2048
      %21 = vsyncadd [#allocation4], %s20
      %s22 = sshll.u32 [#allocation3], 4
      %s23 = int_to_ptr.vmem [resolvable:$true] %s22
      %28 = dma.hbm_to_vmem [thread:$0]  %s1, 2048, %s23, [#allocation4], 128, 128, 8
    $region9: #{tpu_custom_call.1} parent=1 // pred_fallthru
      _
    // Predicated region
    $region10: #{tpu_custom_call.1} parent=1 // pred_check
      _
    $region11: #{tpu_custom_call.1} parent=1 // pred_check_branch
      %30 = sbr.rel (0) target = $region13
    $region12: #{tpu_custom_call.1} parent=1 // pred_region
      _
    $region13: #{tpu_custom_call.1} parent=1 // pred_fallthru
      _
    // Predicated region
    $region14: #{tpu_custom_call.1} parent=1 // pred_check
      _
    $region15: #{tpu_custom_call.1} parent=1 // pred_check_branch
      %32 = sbr.rel (0) target = $region17
    $region16: #{tpu_custom_call.1} parent=1 // pred_region
      _
    $region17: #{tpu_custom_call.1} parent=1 // pred_fallthru
      _
    // Predicated region
    $region18: #{tpu_custom_call.1} parent=1 // pred_check
      _
    $region19: #{tpu_custom_call.1} parent=1 // pred_check_branch
      %34 = sbr.rel (0) target = $region21
    $region20: #{tpu_custom_call.1} parent=1 // pred_region
      %s36 = ssub.s32 1024, 1024
      %37 = vsyncadd [#allocation7], %s36
      %s38 = sshll.u32 [#allocation6], 4
      %s39 = int_to_ptr.vmem [resolvable:$true] %s38
      %44 = dma.hbm_to_vmem [thread:$0]  %s4, 1024, %s39, [#allocation7], 64, 64, 4
    $region21: #{tpu_custom_call.1} parent=1 // pred_fallthru
      _
    // Predicated region
    $region22: #{tpu_custom_call.1} parent=1 // pred_check
      _
    $region23: #{tpu_custom_call.1} parent=1 // pred_check_branch
      %46 = sbr.rel (0) target = $region25
    $region24: #{tpu_custom_call.1} parent=1 // pred_region
      _
    $region25: #{tpu_custom_call.1} parent=1 // pred_fallthru
      _
    // Predicated region
    $region26: #{tpu_custom_call.1} parent=1 // pred_check
      _
    $region27: #{tpu_custom_call.1} parent=1 // pred_check_branch
      %48 = sbr.rel (0) target = $region29
    $region28: #{tpu_custom_call.1} parent=1 // pred_region
      %49 = dma.done [#allocation4], 2048
    $region29: #{tpu_custom_call.1} parent=1 // pred_fallthru
      _
    // Predicated region
    $region30: #{tpu_custom_call.1} parent=1 // pred_check
      _
    $region31: #{tpu_custom_call.1} parent=1 // pred_check_branch
      %51 = sbr.rel (0) target = $region33
    $region32: #{tpu_custom_call.1} parent=1 // pred_region
      %52 = dma.done [#allocation7], 1024
    $region33: #{tpu_custom_call.1} parent=1 // pred_fallthru
      _
    %v54 = vld [vmem:[#allocation3] sm:$0xff]
    %v55 = vld [vmem:[#allocation3 + $0x8] sm:$0xff]
    %v56 = vld [vmem:[#allocation3 + $0x10] sm:$0xff]
    %v57 = vld [vmem:[#allocation3 + $0x18] sm:$0xff]
    %v58 = vld [vmem:[#allocation3 + $0x20] sm:$0xff]
    %v59 = vld [vmem:[#allocation3 + $0x28] sm:$0xff]
    %v60 = vld [vmem:[#allocation3 + $0x30] sm:$0xff]
    %v61 = vld [vmem:[#allocation3 + $0x38] sm:$0xff]
    %v62 = vld [vmem:[#allocation3 + $0x40] sm:$0xff]
    %v63 = vld [vmem:[#allocation3 + $0x48] sm:$0xff]
    %v64 = vld [vmem:[#allocation3 + $0x50] sm:$0xff]
    %v65 = vld [vmem:[#allocation3 + $0x58] sm:$0xff]
    %v66 = vld [vmem:[#allocation3 + $0x60] sm:$0xff]
    %v67 = vld [vmem:[#allocation3 + $0x68] sm:$0xff]
    %v68 = vld [vmem:[#allocation3 + $0x70] sm:$0xff]
    %v69 = vld [vmem:[#allocation3 + $0x78] sm:$0xff]
    %70 = vadd.xlane.f32.xlu0 %v54
    %v71 = vpop.xlane.xlu0 %70
    %72 = vadd.xlane.f32.xlu0 %v55
    %v73 = vpop.xlane.xlu0 %72
    %74 = vadd.xlane.f32.xlu0 %v56
    %v75 = vpop.xlane.xlu0 %74
    %76 = vadd.xlane.f32.xlu0 %v57
    %v77 = vpop.xlane.xlu0 %76
    %78 = vadd.xlane.f32.xlu0 %v58
    %v79 = vpop.xlane.xlu0 %78
    %80 = vadd.xlane.f32.xlu0 %v59
    %v81 = vpop.xlane.xlu0 %80
    %82 = vadd.xlane.f32.xlu0 %v60
    %v83 = vpop.xlane.xlu0 %82
    %84 = vadd.xlane.f32.xlu0 %v61
    %v85 = vpop.xlane.xlu0 %84
    %86 = vadd.xlane.f32.xlu0 %v62
    %v87 = vpop.xlane.xlu0 %86
    %88 = vadd.xlane.f32.xlu0 %v63
    %v89 = vpop.xlane.xlu0 %88
    %90 = vadd.xlane.f32.xlu0 %v64
    %v91 = vpop.xlane.xlu0 %90
    %92 = vadd.xlane.f32.xlu0 %v65
    %v93 = vpop.xlane.xlu0 %92
    %94 = vadd.xlane.f32.xlu0 %v66
    %v95 = vpop.xlane.xlu0 %94
    %96 = vadd.xlane.f32.xlu0 %v67
    %v97 = vpop.xlane.xlu0 %96
    %98 = vadd.xlane.f32.xlu0 %v68
    %v99 = vpop.xlane.xlu0 %98
    %100 = vadd.xlane.f32.xlu0 %v69
    %v101 = vpop.xlane.xlu0 %100
    %v102 = vmul.f32 %v54, %v54
    %v103 = vmul.f32 %v55, %v55
    %v104 = vmul.f32 %v56, %v56
    %v105 = vmul.f32 %v57, %v57
    %v106 = vmul.f32 %v58, %v58
    %v107 = vmul.f32 %v59, %v59
    %v108 = vmul.f32 %v60, %v60
    %v109 = vmul.f32 %v61, %v61
    %v110 = vmul.f32 %v62, %v62
    %v111 = vmul.f32 %v63, %v63
    %v112 = vmul.f32 %v64, %v64
    %v113 = vmul.f32 %v65, %v65
    %v114 = vmul.f32 %v66, %v66
    %v115 = vmul.f32 %v67, %v67
    %v116 = vmul.f32 %v68, %v68
    %v117 = vmul.f32 %v69, %v69
    %118 = vadd.xlane.f32.xlu0 %v102
    %v119 = vpop.xlane.xlu0 %118
    %120 = vadd.xlane.f32.xlu0 %v103
    %v121 = vpop.xlane.xlu0 %120
    %122 = vadd.xlane.f32.xlu0 %v104
    %v123 = vpop.xlane.xlu0 %122
    %124 = vadd.xlane.f32.xlu0 %v105
    %v125 = vpop.xlane.xlu0 %124
    %126 = vadd.xlane.f32.xlu0 %v106
    %v127 = vpop.xlane.xlu0 %126
    %128 = vadd.xlane.f32.xlu0 %v107
    %v129 = vpop.xlane.xlu0 %128
    %130 = vadd.xlane.f32.xlu0 %v108
    %v131 = vpop.xlane.xlu0 %130
    %132 = vadd.xlane.f32.xlu0 %v109
    %v133 = vpop.xlane.xlu0 %132
    %134 = vadd.xlane.f32.xlu0 %v110
    %v135 = vpop.xlane.xlu0 %134
    %136 = vadd.xlane.f32.xlu0 %v111
    %v137 = vpop.xlane.xlu0 %136
    %138 = vadd.xlane.f32.xlu0 %v112
    %v139 = vpop.xlane.xlu0 %138
    %140 = vadd.xlane.f32.xlu0 %v113
    %v141 = vpop.xlane.xlu0 %140
    %142 = vadd.xlane.f32.xlu0 %v114
    %v143 = vpop.xlane.xlu0 %142
    %144 = vadd.xlane.f32.xlu0 %v115
    %v145 = vpop.xlane.xlu0 %144
    %146 = vadd.xlane.f32.xlu0 %v116
    %v147 = vpop.xlane.xlu0 %146
    %148 = vadd.xlane.f32.xlu0 %v117
    %v149 = vpop.xlane.xlu0 %148
    %v150 = vmul.f32 %v71, 0.0078125
    %v151 = vmul.f32 %v73, 0.0078125
    %v152 = vmul.f32 %v75, 0.0078125
    %v153 = vmul.f32 %v77, 0.0078125
    %v154 = vmul.f32 %v79, 0.0078125
    %v155 = vmul.f32 %v81, 0.0078125
    %v156 = vmul.f32 %v83, 0.0078125
    %v157 = vmul.f32 %v85, 0.0078125
    %v158 = vmul.f32 %v87, 0.0078125
    %v159 = vmul.f32 %v89, 0.0078125
    %v160 = vmul.f32 %v91, 0.0078125
    %v161 = vmul.f32 %v93, 0.0078125
    %v162 = vmul.f32 %v95, 0.0078125
    %v163 = vmul.f32 %v97, 0.0078125
    %v164 = vmul.f32 %v99, 0.0078125
    %v165 = vmul.f32 %v101, 0.0078125
    %v166 = vmul.f32 %v71, %v150
    %v167 = vmul.f32 %v73, %v151
    %v168 = vmul.f32 %v75, %v152
    %v169 = vmul.f32 %v77, %v153
    %v170 = vmul.f32 %v79, %v154
    %v171 = vmul.f32 %v81, %v155
    %v172 = vmul.f32 %v83, %v156
    %v173 = vmul.f32 %v85, %v157
    %v174 = vmul.f32 %v87, %v158
    %v175 = vmul.f32 %v89, %v159
    %v176 = vmul.f32 %v91, %v160
    %v177 = vmul.f32 %v93, %v161
    %v178 = vmul.f32 %v95, %v162
    %v179 = vmul.f32 %v97, %v163
    %v180 = vmul.f32 %v99, %v164
    %v181 = vmul.f32 %v101, %v165
    %v182 = vsub.f32 %v119, %v166
    %v183 = vsub.f32 %v121, %v167
    %v184 = vsub.f32 %v123, %v168
    %v185 = vsub.f32 %v125, %v169
    %v186 = vsub.f32 %v127, %v170
    %v187 = vsub.f32 %v129, %v171
    %v188 = vsub.f32 %v131, %v172
    %v189 = vsub.f32 %v133, %v173
    %v190 = vsub.f32 %v135, %v174
    %v191 = vsub.f32 %v137, %v175
    %v192 = vsub.f32 %v139, %v176
    %v193 = vsub.f32 %v141, %v177
    %v194 = vsub.f32 %v143, %v178
    %v195 = vsub.f32 %v145, %v179
    %v196 = vsub.f32 %v147, %v180
    %v197 = vsub.f32 %v149, %v181
    %v198 = vmul.f32 %v182, 0.007874016
    %v199 = vmul.f32 %v183, 0.007874016
    %v200 = vmul.f32 %v184, 0.007874016
    %v201 = vmul.f32 %v185, 0.007874016
    %v202 = vmul.f32 %v186, 0.007874016
    %v203 = vmul.f32 %v187, 0.007874016
    %v204 = vmul.f32 %v188, 0.007874016
    %v205 = vmul.f32 %v189, 0.007874016
    %v206 = vmul.f32 %v190, 0.007874016
    %v207 = vmul.f32 %v191, 0.007874016
    %v208 = vmul.f32 %v192, 0.007874016
    %v209 = vmul.f32 %v193, 0.007874016
    %v210 = vmul.f32 %v194, 0.007874016
    %v211 = vmul.f32 %v195, 0.007874016
    %v212 = vmul.f32 %v196, 0.007874016
    %v213 = vmul.f32 %v197, 0.007874016
    %v214 = vmax.f32 %v198, 0.0
    %v215 = vmax.f32 %v199, 0.0
    %v216 = vmax.f32 %v200, 0.0
    %v217 = vmax.f32 %v201, 0.0
    %v218 = vmax.f32 %v202, 0.0
    %v219 = vmax.f32 %v203, 0.0
    %v220 = vmax.f32 %v204, 0.0
    %v221 = vmax.f32 %v205, 0.0
    %v222 = vmax.f32 %v206, 0.0
    %v223 = vmax.f32 %v207, 0.0
    %v224 = vmax.f32 %v208, 0.0
    %v225 = vmax.f32 %v209, 0.0
    %v226 = vmax.f32 %v210, 0.0
    %v227 = vmax.f32 %v211, 0.0
    %v228 = vmax.f32 %v212, 0.0
    %v229 = vmax.f32 %v213, 0.0
    %v230 = vrsqrt.pop %v214
    %v231 = vmul.f32 %v214, %v230
    %vm232 = vcmp.eq.f32.partialorder %v214, inf
    %v233 = vsel %vm232, %v214, %v231
    %vm234 = vcmp.eq.f32.partialorder %v214, 0.0
    %v235 = vand.u32 %v214, 2147483648
    %v236 = vsel %vm234, %v235, %v233
    %v237 = vrsqrt.pop %v215
    %v238 = vmul.f32 %v215, %v237
    %vm239 = vcmp.eq.f32.partialorder %v215, inf
    %v240 = vsel %vm239, %v215, %v238
    %vm241 = vcmp.eq.f32.partialorder %v215, 0.0
    %v242 = vand.u32 %v215, 2147483648
    %v243 = vsel %vm241, %v242, %v240
    %v244 = vrsqrt.pop %v216
    %v245 = vmul.f32 %v216, %v244
    %vm246 = vcmp.eq.f32.partialorder %v216, inf
    %v247 = vsel %vm246, %v216, %v245
    %vm248 = vcmp.eq.f32.partialorder %v216, 0.0
    %v249 = vand.u32 %v216, 2147483648
    %v250 = vsel %vm248, %v249, %v247
    %v251 = vrsqrt.pop %v217
    %v252 = vmul.f32 %v217, %v251
    %vm253 = vcmp.eq.f32.partialorder %v217, inf
    %v254 = vsel %vm253, %v217, %v252
    %vm255 = vcmp.eq.f32.partialorder %v217, 0.0
    %v256 = vand.u32 %v217, 2147483648
    %v257 = vsel %vm255, %v256, %v254
    %v258 = vrsqrt.pop %v218
    %v259 = vmul.f32 %v218, %v258
    %vm260 = vcmp.eq.f32.partialorder %v218, inf
    %v261 = vsel %vm260, %v218, %v259
    %vm262 = vcmp.eq.f32.partialorder %v218, 0.0
    %v263 = vand.u32 %v218, 2147483648
    %v264 = vsel %vm262, %v263, %v261
    %v265 = vrsqrt.pop %v219
    %v266 = vmul.f32 %v219, %v265
    %vm267 = vcmp.eq.f32.partialorder %v219, inf
    %v268 = vsel %vm267, %v219, %v266
    %vm269 = vcmp.eq.f32.partialorder %v219, 0.0
    %v270 = vand.u32 %v219, 2147483648
    %v271 = vsel %vm269, %v270, %v268
    %v272 = vrsqrt.pop %v220
    %v273 = vmul.f32 %v220, %v272
    %vm274 = vcmp.eq.f32.partialorder %v220, inf
    %v275 = vsel %vm274, %v220, %v273
    %vm276 = vcmp.eq.f32.partialorder %v220, 0.0
    %v277 = vand.u32 %v220, 2147483648
    %v278 = vsel %vm276, %v277, %v275
    %v279 = vrsqrt.pop %v221
    %v280 = vmul.f32 %v221, %v279
    %vm281 = vcmp.eq.f32.partialorder %v221, inf
    %v282 = vsel %vm281, %v221, %v280
    %vm283 = vcmp.eq.f32.partialorder %v221, 0.0
    %v284 = vand.u32 %v221, 2147483648
    %v285 = vsel %vm283, %v284, %v282
    %v286 = vrsqrt.pop %v222
    %v287 = vmul.f32 %v222, %v286
    %vm288 = vcmp.eq.f32.partialorder %v222, inf
    %v289 = vsel %vm288, %v222, %v287
    %vm290 = vcmp.eq.f32.partialorder %v222, 0.0
    %v291 = vand.u32 %v222, 2147483648
    %v292 = vsel %vm290, %v291, %v289
    %v293 = vrsqrt.pop %v223
    %v294 = vmul.f32 %v223, %v293
    %vm295 = vcmp.eq.f32.partialorder %v223, inf
    %v296 = vsel %vm295, %v223, %v294
    %vm297 = vcmp.eq.f32.partialorder %v223, 0.0
    %v298 = vand.u32 %v223, 2147483648
    %v299 = vsel %vm297, %v298, %v296
    %v300 = vrsqrt.pop %v224
    %v301 = vmul.f32 %v224, %v300
    %vm302 = vcmp.eq.f32.partialorder %v224, inf
    %v303 = vsel %vm302, %v224, %v301
    %vm304 = vcmp.eq.f32.partialorder %v224, 0.0
    %v305 = vand.u32 %v224, 2147483648
    %v306 = vsel %vm304, %v305, %v303
    %v307 = vrsqrt.pop %v225
    %v308 = vmul.f32 %v225, %v307
    %vm309 = vcmp.eq.f32.partialorder %v225, inf
    %v310 = vsel %vm309, %v225, %v308
    %vm311 = vcmp.eq.f32.partialorder %v225, 0.0
    %v312 = vand.u32 %v225, 2147483648
    %v313 = vsel %vm311, %v312, %v310
    %v314 = vrsqrt.pop %v226
    %v315 = vmul.f32 %v226, %v314
    %vm316 = vcmp.eq.f32.partialorder %v226, inf
    %v317 = vsel %vm316, %v226, %v315
    %vm318 = vcmp.eq.f32.partialorder %v226, 0.0
    %v319 = vand.u32 %v226, 2147483648
    %v320 = vsel %vm318, %v319, %v317
    %v321 = vrsqrt.pop %v227
    %v322 = vmul.f32 %v227, %v321
    %vm323 = vcmp.eq.f32.partialorder %v227, inf
    %v324 = vsel %vm323, %v227, %v322
    %vm325 = vcmp.eq.f32.partialorder %v227, 0.0
    %v326 = vand.u32 %v227, 2147483648
    %v327 = vsel %vm325, %v326, %v324
    %v328 = vrsqrt.pop %v228
    %v329 = vmul.f32 %v228, %v328
    %vm330 = vcmp.eq.f32.partialorder %v228, inf
    %v331 = vsel %vm330, %v228, %v329
    %vm332 = vcmp.eq.f32.partialorder %v228, 0.0
    %v333 = vand.u32 %v228, 2147483648
    %v334 = vsel %vm332, %v333, %v331
    %v335 = vrsqrt.pop %v229
    %v336 = vmul.f32 %v229, %v335
    %vm337 = vcmp.eq.f32.partialorder %v229, inf
    %v338 = vsel %vm337, %v229, %v336
    %vm339 = vcmp.eq.f32.partialorder %v229, 0.0
    %v340 = vand.u32 %v229, 2147483648
    %v341 = vsel %vm339, %v340, %v338
    %v342 = vadd.f32 %v236, 1e-06
    %v343 = vadd.f32 %v243, 1e-06
    %v344 = vadd.f32 %v250, 1e-06
    %v345 = vadd.f32 %v257, 1e-06
    %v346 = vadd.f32 %v264, 1e-06
    %v347 = vadd.f32 %v271, 1e-06
    %v348 = vadd.f32 %v278, 1e-06
    %v349 = vadd.f32 %v285, 1e-06
    %v350 = vadd.f32 %v292, 1e-06
    %v351 = vadd.f32 %v299, 1e-06
    %v352 = vadd.f32 %v306, 1e-06
    %v353 = vadd.f32 %v313, 1e-06
    %v354 = vadd.f32 %v320, 1e-06
    %v355 = vadd.f32 %v327, 1e-06
    %v356 = vadd.f32 %v334, 1e-06
    %v357 = vadd.f32 %v341, 1e-06
    %v358 = vrcp.pop %v342
    %v359 = vmul.f32 1.0, %v358
    %v360 = vrcp.pop %v343
    %v361 = vmul.f32 1.0, %v360
    %v362 = vrcp.pop %v344
    %v363 = vmul.f32 1.0, %v362
    %v364 = vrcp.pop %v345
    %v365 = vmul.f32 1.0, %v364
    %v366 = vrcp.pop %v346
    %v367 = vmul.f32 1.0, %v366
    %v368 = vrcp.pop %v347
    %v369 = vmul.f32 1.0, %v368
    %v370 = vrcp.pop %v348
    %v371 = vmul.f32 1.0, %v370
    %v372 = vrcp.pop %v349
    %v373 = vmul.f32 1.0, %v372
    %v374 = vrcp.pop %v350
    %v375 = vmul.f32 1.0, %v374
    %v376 = vrcp.pop %v351
    %v377 = vmul.f32 1.0, %v376
    %v378 = vrcp.pop %v352
    %v379 = vmul.f32 1.0, %v378
    %v380 = vrcp.pop %v353
    %v381 = vmul.f32 1.0, %v380
    %v382 = vrcp.pop %v354
    %v383 = vmul.f32 1.0, %v382
    %v384 = vrcp.pop %v355
    %v385 = vmul.f32 1.0, %v384
    %v386 = vrcp.pop %v356
    %v387 = vmul.f32 1.0, %v386
    %v388 = vrcp.pop %v357
    %v389 = vmul.f32 1.0, %v388
    %v390 = vsub.f32 %v54, %v150
    %v391 = vsub.f32 %v55, %v151
    %v392 = vsub.f32 %v56, %v152
    %v393 = vsub.f32 %v57, %v153
    %v394 = vsub.f32 %v58, %v154
    %v395 = vsub.f32 %v59, %v155
    %v396 = vsub.f32 %v60, %v156
    %v397 = vsub.f32 %v61, %v157
    %v398 = vsub.f32 %v62, %v158
    %v399 = vsub.f32 %v63, %v159
    %v400 = vsub.f32 %v64, %v160
    %v401 = vsub.f32 %v65, %v161
    %v402 = vsub.f32 %v66, %v162
    %v403 = vsub.f32 %v67, %v163
    %v404 = vsub.f32 %v68, %v164
    %v405 = vsub.f32 %v69, %v165
    %v406 = vmul.f32 %v390, %v359
    %v407 = vmul.f32 %v391, %v361
    %v408 = vmul.f32 %v392, %v363
    %v409 = vmul.f32 %v393, %v365
    %v410 = vmul.f32 %v394, %v367
    %v411 = vmul.f32 %v395, %v369
    %v412 = vmul.f32 %v396, %v371
    %v413 = vmul.f32 %v397, %v373
    %v414 = vmul.f32 %v398, %v375
    %v415 = vmul.f32 %v399, %v377
    %v416 = vmul.f32 %v400, %v379
    %v417 = vmul.f32 %v401, %v381
    %v418 = vmul.f32 %v402, %v383
    %v419 = vmul.f32 %v403, %v385
    %v420 = vmul.f32 %v404, %v387
    %v421 = vmul.f32 %v405, %v389
    %v422 = vld [vmem:[%s2] sm:$0x1]
    %v424 = vlaneseq
    %v425 = vshrl.u32 %v424, 7
    %v426 = vsub.s32 0, %v425
    %v427 = vrot.slane %v422, %v426
    %v429 = vmul.f32 %v406, %v427
    %v430 = vmul.f32 %v407, %v427
    %v431 = vmul.f32 %v408, %v427
    %v432 = vmul.f32 %v409, %v427
    %v433 = vmul.f32 %v410, %v427
    %v434 = vmul.f32 %v411, %v427
    %v435 = vmul.f32 %v412, %v427
    %v436 = vmul.f32 %v413, %v427
    %v437 = vmul.f32 %v414, %v427
    %v438 = vmul.f32 %v415, %v427
    %v439 = vmul.f32 %v416, %v427
    %v440 = vmul.f32 %v417, %v427
    %v441 = vmul.f32 %v418, %v427
    %v442 = vmul.f32 %v419, %v427
    %v443 = vmul.f32 %v420, %v427
    %v444 = vmul.f32 %v421, %v427
    %v445 = vld [vmem:[%s3] sm:$0x1]
    %v447 = vlaneseq
    %v448 = vshrl.u32 %v447, 7
    %v449 = vsub.s32 0, %v448
    %v450 = vrot.slane %v445, %v449
    %v452 = vadd.f32 %v429, %v450
    %v453 = vadd.f32 %v430, %v450
    %v454 = vadd.f32 %v431, %v450
    %v455 = vadd.f32 %v432, %v450
    %v456 = vadd.f32 %v433, %v450
    %v457 = vadd.f32 %v434, %v450
    %v458 = vadd.f32 %v435, %v450
    %v459 = vadd.f32 %v436, %v450
    %v460 = vadd.f32 %v437, %v450
    %v461 = vadd.f32 %v438, %v450
    %v462 = vadd.f32 %v439, %v450
    %v463 = vadd.f32 %v440, %v450
    %v464 = vadd.f32 %v441, %v450
    %v465 = vadd.f32 %v442, %v450
    %v466 = vadd.f32 %v443, %v450
    %v467 = vadd.f32 %v444, %v450
    %v468 = vpack.c.bf16 %v453, %v452
    %v469 = vpack.c.bf16 %v455, %v454
    %v470 = vpack.c.bf16 %v457, %v456
    %v471 = vpack.c.bf16 %v459, %v458
    %v472 = vpack.c.bf16 %v461, %v460
    %v473 = vpack.c.bf16 %v463, %v462
    %v474 = vpack.c.bf16 %v465, %v464
    %v475 = vpack.c.bf16 %v467, %v466
    %v476 = vld [vmem:[#allocation6] sm:$0xf]
    %v477 = vld [vmem:[#allocation6 + $0x4] sm:$0xf]
    %v478 = vld [vmem:[#allocation6 + $0x8] sm:$0xf]
    %v479 = vld [vmem:[#allocation6 + $0xc] sm:$0xf]
    %v480 = vld [vmem:[#allocation6 + $0x10] sm:$0xf]
    %v481 = vld [vmem:[#allocation6 + $0x14] sm:$0xf]
    %v482 = vld [vmem:[#allocation6 + $0x18] sm:$0xf]
    %v483 = vld [vmem:[#allocation6 + $0x1c] sm:$0xf]
    %v484 = vld [vmem:[#allocation6 + $0x20] sm:$0xf]
    %v485 = vld [vmem:[#allocation6 + $0x24] sm:$0xf]
    %v486 = vld [vmem:[#allocation6 + $0x28] sm:$0xf]
    %v487 = vld [vmem:[#allocation6 + $0x2c] sm:$0xf]
    %v488 = vld [vmem:[#allocation6 + $0x30] sm:$0xf]
    %v489 = vld [vmem:[#allocation6 + $0x34] sm:$0xf]
    %v490 = vld [vmem:[#allocation6 + $0x38] sm:$0xf]
    %v491 = vld [vmem:[#allocation6 + $0x3c] sm:$0xf]
    %v492 = vld [vmem:[%s5] sm:$0x1]
    %v494 = vlaneseq
    %v495 = vshrl.u32 %v494, 7
    %v496 = vsub.s32 0, %v495
    %v497 = vrot.slane %v492, %v496
    %v515 = vunpack.c.l.b16 %v476
    %v516 = vunpack.c.l.b16 %v477
    %v517 = vunpack.c.l.b16 %v478
    %v518 = vunpack.c.l.b16 %v479
    %v519 = vunpack.c.l.b16 %v480
    %v520 = vunpack.c.l.b16 %v481
    %v521 = vunpack.c.l.b16 %v482
    %v522 = vunpack.c.l.b16 %v483
    %v523 = vunpack.c.l.b16 %v484
    %v524 = vunpack.c.l.b16 %v485
    %v525 = vunpack.c.l.b16 %v486
    %v526 = vunpack.c.l.b16 %v487
    %v527 = vunpack.c.l.b16 %v488
    %v528 = vunpack.c.l.b16 %v489
    %v529 = vunpack.c.l.b16 %v490
    %v530 = vunpack.c.l.b16 %v491
    %v531 = vpack.c.b16 %v516, %v515
    %v532 = vpack.c.b16 %v518, %v517
    %v533 = vpack.c.b16 %v520, %v519
    %v534 = vpack.c.b16 %v522, %v521
    %v535 = vpack.c.b16 %v524, %v523
    %v536 = vpack.c.b16 %v526, %v525
    %v537 = vpack.c.b16 %v528, %v527
    %v538 = vpack.c.b16 %v530, %v529
    %547 = vmatprep.subr.bf16.mxu0 0
    %548 = vmatpush1.bf16.msra.mxu0 %v538
    %549 = vmatprep.subr.bf16.mxu0 0
    %550 = vmatpush1.bf16.msra.mxu0 %v537
    %551 = vmatprep.subr.bf16.mxu0 0
    %552 = vmatpush1.bf16.msra.mxu0 %v536
    %553 = vmatprep.subr.bf16.mxu0 0
    %554 = vmatpush1.bf16.msra.mxu0 %v535
    %555 = vmatprep.subr.bf16.mxu0 0
    %556 = vmatpush1.bf16.msra.mxu0 %v534
    %557 = vmatprep.subr.bf16.mxu0 0
    %558 = vmatpush1.bf16.msra.mxu0 %v533
    %559 = vmatprep.subr.bf16.mxu0 0
    %560 = vmatpush1.bf16.msra.mxu0 %v532
    %561 = vmatprep.subr.bf16.mxu0 0
    %562 = vmatpush1.bf16.msra.mxu0 %v531
    %563 = vmatprep.subr.bf16.mxu0 0
    %564 = vmatpush2.bf16.msra.mxu0 0
    %565 = vmatprep.subr.bf16.mxu0 0
    %566 = vmatpush2.bf16.msra.mxu0 0
    %567 = vmatprep.subr.bf16.mxu0 0
    %568 = vmatpush2.bf16.msra.mxu0 0
    %569 = vmatprep.subr.bf16.mxu0 0
    %570 = vmatpush2.bf16.msra.mxu0 0
    %571 = vmatprep.subr.bf16.mxu0 0
    %572 = vmatpush2.bf16.msra.mxu0 0
    %573 = vmatprep.subr.bf16.mxu0 0
    %574 = vmatpush2.bf16.msra.mxu0 0
    %575 = vmatprep.subr.bf16.mxu0 0
    %576 = vmatpush2.bf16.msra.mxu0 0
    %577 = vmatprep.subr.bf16.mxu0 0
    %578 = vmatpush2.bf16.msra.mxu0 0
    %579 = vmatprep.mubr.bf16.mxu0 0
    %580 = vmatmul.mubr.bf16.gmra.mxu0 %v468
    %v581 = vpop.f32.mrf.mxu0
    %v582 = vadd.f32 %v497, %v581
    %v583 = vpop.f32.mrf.mxu0
    %v584 = vpop.f32.mrf.mxu0
    %v585 = vadd.f32 %v497, %v584
    %v586 = vpop.f32.mrf.mxu0
    %587 = vmatprep.mubr.bf16.mxu0 0
    %588 = vmatmul.mubr.bf16.gmra.mxu0 %v469
    %v589 = vpop.f32.mrf.mxu0
    %v590 = vadd.f32 %v497, %v589
    %v591 = vpop.f32.mrf.mxu0
    %v592 = vpop.f32.mrf.mxu0
    %v593 = vadd.f32 %v497, %v592
    %v594 = vpop.f32.mrf.mxu0
    %595 = vmatprep.mubr.bf16.mxu0 0
    %596 = vmatmul.mubr.bf16.gmra.mxu0 %v470
    %v597 = vpop.f32.mrf.mxu0
    %v598 = vadd.f32 %v497, %v597
    %v599 = vpop.f32.mrf.mxu0
    %v600 = vpop.f32.mrf.mxu0
    %v601 = vadd.f32 %v497, %v600
    %v602 = vpop.f32.mrf.mxu0
    %603 = vmatprep.mubr.bf16.mxu0 0
    %604 = vmatmul.mubr.bf16.gmra.mxu0 %v471
    %v605 = vpop.f32.mrf.mxu0
    %v606 = vadd.f32 %v497, %v605
    %v607 = vpop.f32.mrf.mxu0
    %v608 = vpop.f32.mrf.mxu0
    %v609 = vadd.f32 %v497, %v608
    %v610 = vpop.f32.mrf.mxu0
    %611 = vmatprep.mubr.bf16.mxu0 0
    %612 = vmatmul.mubr.bf16.gmra.mxu0 %v472
    %v613 = vpop.f32.mrf.mxu0
    %v614 = vadd.f32 %v497, %v613
    %v615 = vpop.f32.mrf.mxu0
    %v616 = vpop.f32.mrf.mxu0
    %v617 = vadd.f32 %v497, %v616
    %v618 = vpop.f32.mrf.mxu0
    %619 = vmatprep.mubr.bf16.mxu0 0
    %620 = vmatmul.mubr.bf16.gmra.mxu0 %v473
    %v621 = vpop.f32.mrf.mxu0
    %v622 = vadd.f32 %v497, %v621
    %v623 = vpop.f32.mrf.mxu0
    %v624 = vpop.f32.mrf.mxu0
    %v625 = vadd.f32 %v497, %v624
    %v626 = vpop.f32.mrf.mxu0
    %627 = vmatprep.mubr.bf16.mxu0 0
    %628 = vmatmul.mubr.bf16.gmra.mxu0 %v474
    %v629 = vpop.f32.mrf.mxu0
    %v630 = vadd.f32 %v497, %v629
    %v631 = vpop.f32.mrf.mxu0
    %v632 = vpop.f32.mrf.mxu0
    %v633 = vadd.f32 %v497, %v632
    %v634 = vpop.f32.mrf.mxu0
    %635 = vmatprep.mubr.bf16.mxu0 0
    %636 = vmatmul.mubr.bf16.gmra.mxu0 %v475
    %v637 = vpop.f32.mrf.mxu0
    %v638 = vadd.f32 %v497, %v637
    %v639 = vpop.f32.mrf.mxu0
    %v640 = vpop.f32.mrf.mxu0
    %v641 = vadd.f32 %v497, %v640
    %v642 = vpop.f32.mrf.mxu0
    %643 = vdwg.mxu0
    %v644 = vmul.f32 %v582, %v582
    %v645 = vmul.f32 %v585, %v585
    %v646 = vmul.f32 %v590, %v590
    %v647 = vmul.f32 %v593, %v593
    %v648 = vmul.f32 %v598, %v598
    %v649 = vmul.f32 %v601, %v601
    %v650 = vmul.f32 %v606, %v606
    %v651 = vmul.f32 %v609, %v609
    %v652 = vmul.f32 %v614, %v614
    %v653 = vmul.f32 %v617, %v617
    %v654 = vmul.f32 %v622, %v622
    %v655 = vmul.f32 %v625, %v625
    %v656 = vmul.f32 %v630, %v630
    %v657 = vmul.f32 %v633, %v633
    %v658 = vmul.f32 %v638, %v638
    %v659 = vmul.f32 %v641, %v641
    %v660 = vmul.f32 %v582, %v644
    %v661 = vmul.f32 %v585, %v645
    %v662 = vmul.f32 %v590, %v646
    %v663 = vmul.f32 %v593, %v647
    %v664 = vmul.f32 %v598, %v648
    %v665 = vmul.f32 %v601, %v649
    %v666 = vmul.f32 %v606, %v650
    %v667 = vmul.f32 %v609, %v651
    %v668 = vmul.f32 %v614, %v652
    %v669 = vmul.f32 %v617, %v653
    %v670 = vmul.f32 %v622, %v654
    %v671 = vmul.f32 %v625, %v655
    %v672 = vmul.f32 %v630, %v656
    %v673 = vmul.f32 %v633, %v657
    %v674 = vmul.f32 %v638, %v658
    %v675 = vmul.f32 %v641, %v659
    %v676 = vmul.f32 %v660, 0.044715
    %v677 = vmul.f32 %v661, 0.044715
    %v678 = vmul.f32 %v662, 0.044715
    %v679 = vmul.f32 %v663, 0.044715
    %v680 = vmul.f32 %v664, 0.044715
    %v681 = vmul.f32 %v665, 0.044715
    %v682 = vmul.f32 %v666, 0.044715
    %v683 = vmul.f32 %v667, 0.044715
    %v684 = vmul.f32 %v668, 0.044715
    %v685 = vmul.f32 %v669, 0.044715
    %v686 = vmul.f32 %v670, 0.044715
    %v687 = vmul.f32 %v671, 0.044715
    %v688 = vmul.f32 %v672, 0.044715
    %v689 = vmul.f32 %v673, 0.044715
    %v690 = vmul.f32 %v674, 0.044715
    %v691 = vmul.f32 %v675, 0.044715
    %v692 = vadd.f32 %v582, %v676
    %v693 = vadd.f32 %v585, %v677
    %v694 = vadd.f32 %v590, %v678
    %v695 = vadd.f32 %v593, %v679
    %v696 = vadd.f32 %v598, %v680
    %v697 = vadd.f32 %v601, %v681
    %v698 = vadd.f32 %v606, %v682
    %v699 = vadd.f32 %v609, %v683
    %v700 = vadd.f32 %v614, %v684
    %v701 = vadd.f32 %v617, %v685
    %v702 = vadd.f32 %v622, %v686
    %v703 = vadd.f32 %v625, %v687
    %v704 = vadd.f32 %v630, %v688
    %v705 = vadd.f32 %v633, %v689
    %v706 = vadd.f32 %v638, %v690
    %v707 = vadd.f32 %v641, %v691
    %v708 = vmul.f32 %v692, 0.7978846
    %v709 = vmul.f32 %v693, 0.7978846
    %v710 = vmul.f32 %v694, 0.7978846
    %v711 = vmul.f32 %v695, 0.7978846
    %v712 = vmul.f32 %v696, 0.7978846
    %v713 = vmul.f32 %v697, 0.7978846
    %v714 = vmul.f32 %v698, 0.7978846
    %v715 = vmul.f32 %v699, 0.7978846
    %v716 = vmul.f32 %v700, 0.7978846
    %v717 = vmul.f32 %v701, 0.7978846
    %v718 = vmul.f32 %v702, 0.7978846
    %v719 = vmul.f32 %v703, 0.7978846
    %v720 = vmul.f32 %v704, 0.7978846
    %v721 = vmul.f32 %v705, 0.7978846
    %v722 = vmul.f32 %v706, 0.7978846
    %v723 = vmul.f32 %v707, 0.7978846
    %v724 = vtanh.pop %v708
    %v725 = vtanh.pop %v709
    %v726 = vtanh.pop %v710
    %v727 = vtanh.pop %v711
    %v728 = vtanh.pop %v712
    %v729 = vtanh.pop %v713
    %v730 = vtanh.pop %v714
    %v731 = vtanh.pop %v715
    %v732 = vtanh.pop %v716
    %v733 = vtanh.pop %v717
    %v734 = vtanh.pop %v718
    %v735 = vtanh.pop %v719
    %v736 = vtanh.pop %v720
    %v737 = vtanh.pop %v721
    %v738 = vtanh.pop %v722
    %v739 = vtanh.pop %v723
    %v740 = vadd.f32 %v724, 1.0
    %v741 = vadd.f32 %v725, 1.0
    %v742 = vadd.f32 %v726, 1.0
    %v743 = vadd.f32 %v727, 1.0
    %v744 = vadd.f32 %v728, 1.0
    %v745 = vadd.f32 %v729, 1.0
    %v746 = vadd.f32 %v730, 1.0
    %v747 = vadd.f32 %v731, 1.0
    %v748 = vadd.f32 %v732, 1.0
    %v749 = vadd.f32 %v733, 1.0
    %v750 = vadd.f32 %v734, 1.0
    %v751 = vadd.f32 %v735, 1.0
    %v752 = vadd.f32 %v736, 1.0
    %v753 = vadd.f32 %v737, 1.0
    %v754 = vadd.f32 %v738, 1.0
    %v755 = vadd.f32 %v739, 1.0
    %v756 = vmul.f32 %v740, 0.5
    %v757 = vmul.f32 %v741, 0.5
    %v758 = vmul.f32 %v742, 0.5
    %v759 = vmul.f32 %v743, 0.5
    %v760 = vmul.f32 %v744, 0.5
    %v761 = vmul.f32 %v745, 0.5
    %v762 = vmul.f32 %v746, 0.5
    %v763 = vmul.f32 %v747, 0.5
    %v764 = vmul.f32 %v748, 0.5
    %v765 = vmul.f32 %v749, 0.5
    %v766 = vmul.f32 %v750, 0.5
    %v767 = vmul.f32 %v751, 0.5
    %v768 = vmul.f32 %v752, 0.5
    %v769 = vmul.f32 %v753, 0.5
    %v770 = vmul.f32 %v754, 0.5
    %v771 = vmul.f32 %v755, 0.5
    %v772 = vmul.f32 %v582, %v756
    %v773 = vmul.f32 %v585, %v757
    %v774 = vmul.f32 %v590, %v758
    %v775 = vmul.f32 %v593, %v759
    %v776 = vmul.f32 %v598, %v760
    %v777 = vmul.f32 %v601, %v761
    %v778 = vmul.f32 %v606, %v762
    %v779 = vmul.f32 %v609, %v763
    %v780 = vmul.f32 %v614, %v764
    %v781 = vmul.f32 %v617, %v765
    %v782 = vmul.f32 %v622, %v766
    %v783 = vmul.f32 %v625, %v767
    %v784 = vmul.f32 %v630, %v768
    %v785 = vmul.f32 %v633, %v769
    %v786 = vmul.f32 %v638, %v770
    %v787 = vmul.f32 %v641, %v771
    %v788 = vadd.f32 %v54, %v772
    %v789 = vadd.f32 %v55, %v773
    %v790 = vadd.f32 %v56, %v774
    %v791 = vadd.f32 %v57, %v775
    %v792 = vadd.f32 %v58, %v776
    %v793 = vadd.f32 %v59, %v777
    %v794 = vadd.f32 %v60, %v778
    %v795 = vadd.f32 %v61, %v779
    %v796 = vadd.f32 %v62, %v780
    %v797 = vadd.f32 %v63, %v781
    %v798 = vadd.f32 %v64, %v782
    %v799 = vadd.f32 %v65, %v783
    %v800 = vadd.f32 %v66, %v784
    %v801 = vadd.f32 %v67, %v785
    %v802 = vadd.f32 %v68, %v786
    %v803 = vadd.f32 %v69, %v787
    %804 = vst [vmem:[#allocation8] sm:$0xff] %v788
    %805 = vst [vmem:[#allocation8 + $0x8] sm:$0xff] %v789
    %806 = vst [vmem:[#allocation8 + $0x10] sm:$0xff] %v790
    %807 = vst [vmem:[#allocation8 + $0x18] sm:$0xff] %v791
    %808 = vst [vmem:[#allocation8 + $0x20] sm:$0xff] %v792
    %809 = vst [vmem:[#allocation8 + $0x28] sm:$0xff] %v793
    %810 = vst [vmem:[#allocation8 + $0x30] sm:$0xff] %v794
    %811 = vst [vmem:[#allocation8 + $0x38] sm:$0xff] %v795
    %812 = vst [vmem:[#allocation8 + $0x40] sm:$0xff] %v796
    %813 = vst [vmem:[#allocation8 + $0x48] sm:$0xff] %v797
    %814 = vst [vmem:[#allocation8 + $0x50] sm:$0xff] %v798
    %815 = vst [vmem:[#allocation8 + $0x58] sm:$0xff] %v799
    %816 = vst [vmem:[#allocation8 + $0x60] sm:$0xff] %v800
    %817 = vst [vmem:[#allocation8 + $0x68] sm:$0xff] %v801
    %818 = vst [vmem:[#allocation8 + $0x70] sm:$0xff] %v802
    %819 = vst [vmem:[#allocation8 + $0x78] sm:$0xff] %v803
    // Predicated region
    $region34: #{tpu_custom_call.1} parent=1 // pred_check
      _
    $region35: #{tpu_custom_call.1} parent=1 // pred_check_branch
      %821 = sbr.rel (0) target = $region37
    $region36: #{tpu_custom_call.1} parent=1 // pred_region
      %s823 = ssub.s32 2048, 2048
      %824 = vsyncadd [#allocation5], %s823
      %s825 = sshll.u32 [#allocation8], 4
      %s826 = int_to_ptr.vmem [resolvable:$true] %s825
      %831 = dma.vmem_to_hbm [thread:$0]  %s826, 2048, %s6, [#allocation5], 128, 128, 8
    $region37: #{tpu_custom_call.1} parent=1 // pred_fallthru
      _
    // Predicated region
    $region38: #{tpu_custom_call.1} parent=1 // pred_check
      _
    $region39: #{tpu_custom_call.1} parent=1 // pred_check_branch
      %833 = sbr.rel (0) target = $region41
    $region40: #{tpu_custom_call.1} parent=1 // pred_region
      %834 = dma.done [#allocation5], 2048
    $region41: #{tpu_custom_call.1} parent=1 // pred_fallthru
      _
    %835 = vsyncpa [#allocation4], 1
    %836 = vsyncpa [#allocation7], 1
    %837 = vsyncpa [#allocation5], 1

</llo_original>
